<compile_context>
chip_gen: v6e
topology: v6e:2x2x1
jax: 0.10.0
libtpu: 0.0.40
codegen_flags: <defaults>
</compile_context>

<pallas_src>
import functools

import jax
import jax.numpy as jnp
from jax.experimental import pallas as pl
from jax.experimental.pallas import tpu as pltpu


def _proj_norm_kernel(x_ref, w_ref, b_ref, g_ref, beta_ref, o_ref,
                      *, eps, d, tokens_per_block):
    # x_ref:    (B_pad, E)                image embeds (streaming dtype, resident)
    # w_ref:    (E, tokens_per_block*D)   weight columns for this token group
    # b_ref:    (1, tokens_per_block*D)   bias slice for this token group
    # g_ref:    (1, D)                    LayerNorm gamma
    # beta_ref: (1, D)                    LayerNorm beta
    # o_ref:    (B_pad, tokens_per_block*D)  lane-dense output slab
    y = jnp.dot(x_ref[...], w_ref[...],
                preferred_element_type=jnp.float32)          # (B_pad, W) f32

    bias = b_ref[...].astype(jnp.float32)                    # (1, W)
    b_pad = y.shape[0]
    # Hoist the (1,D)->(B_pad,D) broadcasts out of the unrolled loop.
    gamma = jnp.broadcast_to(g_ref[...].astype(jnp.float32), (b_pad, d))
    beta = jnp.broadcast_to(beta_ref[...].astype(jnp.float32), (b_pad, d))

    # LayerNorm each token's D-wide slice; slices are static and 128-lane
    # aligned, so this stays in full (8,128) tiles with unmasked stores.
    for i in range(tokens_per_block):
        sl = slice(i * d, (i + 1) * d)
        yt = y[:, sl] + bias[:, sl]                           # bias folded per token
        mean = jnp.mean(yt, axis=-1, keepdims=True)
        centered = yt - mean
        var = jnp.mean(centered * centered, axis=-1, keepdims=True)
        inv = jax.lax.rsqrt(var + eps)
        o_ref[:, sl] = (centered * inv * gamma + beta).astype(o_ref.dtype)


def prepare_proj_params(w, b, gamma, beta, *, weight_dtype=jnp.bfloat16):
    """One-time (model-init) parameter preparation.

    Casting the weight matrix to the streaming dtype here — NOT per forward
    call — is essential: the kernel is weight-HBM-bound and a per-call
    convert would read+write the whole matrix an extra time every call.
    """
    return (jnp.asarray(w).astype(weight_dtype),
            jnp.asarray(b).astype(jnp.float32),
            jnp.asarray(gamma).astype(jnp.float32),
            jnp.asarray(beta).astype(jnp.float32))


def _choose_tokens_per_block(T, E, D, weight_itemsize,
                             weight_block_budget_bytes=4 << 20,
                             min_blocks=4):
    """Largest token group whose weight block fits the VMEM budget while
    keeping >= min(min_blocks, T) grid steps (>= 2 per v7x TensorCore)."""
    target_blocks = min(min_blocks, T)
    best = 1
    for k in range(1, T + 1):
        if T % k:
            continue
        if T // k < target_blocks:
            break
        if E * k * D * weight_itemsize <= weight_block_budget_bytes:
            best = k
    return best


def proj_model_forward(image_embeds, w, b, gamma, beta,
                       *, clip_extra_context_tokens, cross_attention_dim,
                       eps=1e-5, tokens_per_block=None,
                       weight_block_budget_bytes=4 << 20):
    """Pallas equivalent of ProjModel.forward.

    image_embeds: (B, clip_embeddings_dim)
    w:            (clip_embeddings_dim, T * cross_attention_dim)   (y = x @ w + b)
    b:            (T * cross_attention_dim,)
    gamma, beta:  (cross_attention_dim,)
    returns:      (B, T, cross_attention_dim), same dtype as image_embeds

    w/b/gamma/beta are streamed in the dtype they are given in — convert them
    once at init with prepare_proj_params(), never per call.
    """
    B, E = image_embeds.shape
    T = clip_extra_context_tokens
    D = cross_attention_dim
    assert B >= 1
    assert w.shape == (E, T * D)
    assert b.size == T * D and gamma.size == D and beta.size == D
    # Lane alignment is assumed by the per-token slices / (1, D) params /
    # unmasked output stores — fail loudly instead of degrading silently.
    assert E % 128 == 0, f"clip_embeddings_dim must be a multiple of 128, got {E}"
    assert D % 128 == 0, f"cross_attention_dim must be a multiple of 128, got {D}"

    out_dtype = image_embeds.dtype
    w_itemsize = jnp.dtype(w.dtype).itemsize
    out_itemsize = jnp.dtype(out_dtype).itemsize

    # Token grouping from a VMEM budget (weight block ~<= budget, >= min(4,T)
    # grid steps so both v7x TensorCores get >= 2 pipelined steps each).
    if tokens_per_block is None:
        tokens_per_block = _choose_tokens_per_block(
            T, E, D, w_itemsize, weight_block_budget_bytes)
    assert T % tokens_per_block == 0
    n_blocks = T // tokens_per_block
    W = tokens_per_block * D

    # Pad batch so matmul LHS, LN reductions and output stores are full vregs.
    # 16 sublanes for 2-byte output dtypes (full packed store tiles), else 8.
    sub = 16 if out_itemsize == 2 else 8
    B_pad = max(sub, ((B + sub - 1) // sub) * sub)

    # Match activation dtype to the (pre-converted) weight streaming dtype.
    # x traffic is tiny (B*E), so this per-call cast is negligible.
    x_c = image_embeds.astype(w.dtype)
    if B_pad != B:
        x_c = jnp.zeros((B_pad, E), x_c.dtype).at[:B].set(x_c)
    x_itemsize = jnp.dtype(x_c.dtype).itemsize

    b2 = jnp.asarray(b).reshape(1, T * D)
    g2 = jnp.asarray(gamma).reshape(1, D)
    beta2 = jnp.asarray(beta).reshape(1, D)

    # Explicit VMEM limit sized from the actual blocks (+ slack), portable
    # across v5e (16 MiB default scoped) / v6e (32 MiB) / v7x (64 MiB phys).
    n_wbuf = 3 if n_blocks >= 8 else 2
    vmem_needed = (
        n_wbuf * E * W * w_itemsize            # weight (multi-)buffer
        + 2 * B_pad * E * x_itemsize           # x block (resident)
        + 2 * W * 4 + 4 * D * 4                # bias, gamma, beta
        + 2 * B_pad * W * out_itemsize         # output double-buffer
        + B_pad * W * 4)                       # f32 intermediate headroom
    vmem_limit = int(max(16 << 20, min(64 << 20, vmem_needed + (4 << 20))))

    cost = pl.CostEstimate(
        flops=2 * B_pad * E * T * D,
        transcendentals=B_pad * T,             # one rsqrt per (row, token)
        bytes_accessed=(E * T * D * w_itemsize     # weights (dominant)
                        + B_pad * E * x_itemsize   # activations
                        + T * D * 4 + 2 * D * 4    # bias, gamma, beta
                        + B_pad * T * D * out_itemsize))

    # Weight BlockSpec: triple-buffer once there are enough steps to benefit.
    if n_blocks >= 8:
        w_spec = pl.BlockSpec((E, W), lambda t: (0, t),
                              pipeline_mode=pl.Buffered(3))
    else:
        w_spec = pl.BlockSpec((E, W), lambda t: (0, t))

    out2d = pl.pallas_call(
        functools.partial(_proj_norm_kernel, eps=eps, d=D,
                          tokens_per_block=tokens_per_block),
        out_shape=jax.ShapeDtypeStruct((B_pad, T * D), out_dtype),
        grid_spec=pltpu.PrefetchScalarGridSpec(
            num_scalar_prefetch=0,
            grid=(n_blocks,),
            in_specs=[
                pl.BlockSpec((B_pad, E), lambda t: (0, 0)),  # x: resident
                w_spec,                                      # weight col group
                pl.BlockSpec((1, W), lambda t: (0, t)),      # bias slice
                pl.BlockSpec((1, D), lambda t: (0, 0)),      # gamma
                pl.BlockSpec((1, D), lambda t: (0, 0)),      # beta
            ],
            out_specs=pl.BlockSpec((B_pad, W), lambda t: (0, t)),
        ),
        compiler_params=pltpu.CompilerParams(
            dimension_semantics=("parallel",),
            vmem_limit_bytes=vmem_limit),
        cost_estimate=cost,
    )(x_c, w, b2, g2, beta2)

    # Lane-dense (B_pad, T*D) -> trim batch padding -> free row-major reshape,
    # which exactly matches torch's reshape(-1, T, D).
    return out2d[:B].reshape(B, T, D)


def _reference(image_embeds, w, b, gamma, beta, T, D, eps=1e-5):
    y = image_embeds @ w + b
    y = y.reshape(-1, T, D)
    mean = y.mean(-1, keepdims=True)
    var = ((y - mean) ** 2).mean(-1, keepdims=True)
    return (y - mean) / jnp.sqrt(var + eps) * gamma + beta


if __name__ == "__main__":
    # Small shapes consistent with the module (dims scaled down, TPU-tile friendly).
    batch = 2
    clip_embeddings_dim = 128       # E
    cross_attention_dim = 128       # D
    clip_extra_context_tokens = 4   # T

    key = jax.random.PRNGKey(0)
    k_x, k_w, k_b, k_g, k_beta = jax.random.split(key, 5)

    x = jax.random.normal(k_x, (batch, clip_embeddings_dim), dtype=jnp.float32)
    w = jax.random.normal(
        k_w,
        (clip_embeddings_dim, clip_extra_context_tokens * cross_attention_dim),
        dtype=jnp.float32) * 0.02
    b = jax.random.normal(
        k_b, (clip_extra_context_tokens * cross_attention_dim,),
        dtype=jnp.float32) * 0.02
    gamma = jnp.ones((cross_attention_dim,), jnp.float32)
    beta = jnp.zeros((cross_attention_dim,), jnp.float32)

    # One-time (init-time) parameter preparation: weights stored in bf16,
    # so the hot forward path has NO per-call weight convert.
    w_c, b_c, g_c, beta_c = prepare_proj_params(w, b, gamma, beta,
                                                weight_dtype=jnp.bfloat16)

    out = proj_model_forward(
        x, w_c, b_c, g_c, beta_c,
        clip_extra_context_tokens=clip_extra_context_tokens,
        cross_attention_dim=cross_attention_dim)
    out = jax.block_until_ready(out)

    ref = _reference(x, w, b, gamma, beta,
                     clip_extra_context_tokens, cross_attention_dim)
    assert out.shape == (batch, clip_extra_context_tokens, cross_attention_dim)
    # bf16 operand streaming (f32 accumulation) -> compare at bf16-level tolerance.
    assert jnp.allclose(out, ref, atol=3e-2, rtol=3e-2), \
        f"max abs err = {jnp.max(jnp.abs(out - ref))}"

    print("KERNEL_OK")
</pallas_src>

<mosaic_0001>
module attributes {stable_mosaic.version = 11 : i64} {
  func.func @_proj_norm_kernel(%arg0: i32, %arg1: memref<8x128xbf16, #tpu.memory_space<vmem>>, %arg2: memref<128x128xbf16, #tpu.memory_space<vmem>>, %arg3: memref<1x128xf32, #tpu.memory_space<vmem>>, %arg4: memref<1x128xf32, #tpu.memory_space<vmem>>, %arg5: memref<1x128xf32, #tpu.memory_space<vmem>>, %arg6: memref<8x128xf32, #tpu.memory_space<vmem>>) attributes {dimension_semantics = [#tpu.dimension_semantics<parallel>], iteration_bounds = array<i64: 4>, scalar_prefetch = 0 : i64, scratch_operands = 0 : i64, tpu.core_type = #tpu.core_type<tc>, window_params = [{pipeline_mode = #tpu.pipeline_mode<synchronous>, transform_indices = @transform_0, window_bounds = array<i64: 8, 128>}, {transform_indices = @transform_1, window_bounds = array<i64: 128, 128>}, {transform_indices = @transform_2, window_bounds = array<i64: 1, 128>}, {pipeline_mode = #tpu.pipeline_mode<synchronous>, transform_indices = @transform_3, window_bounds = array<i64: 1, 128>}, {pipeline_mode = #tpu.pipeline_mode<synchronous>, transform_indices = @transform_4, window_bounds = array<i64: 1, 128>}, {transform_indices = @transform_5, window_bounds = array<i64: 8, 128>}]} {
    %c0 = arith.constant 0 : index
    %c0_0 = arith.constant 0 : index
    %0 = vector.load %arg1[%c0, %c0_0] : memref<8x128xbf16, #tpu.memory_space<vmem>>, vector<8x128xbf16>
    %c0_1 = arith.constant 0 : index
    %c0_2 = arith.constant 0 : index
    %1 = vector.load %arg2[%c0_1, %c0_2] : memref<128x128xbf16, #tpu.memory_space<vmem>>, vector<128x128xbf16>
    %cst = arith.constant dense<0.000000e+00> : vector<8x128xf32>
    %2 = tpu.matmul %0, %1, %cst {dimension_numbers = #tpu.dot_dimension_numbers<[1], [0], [0], [1], [0, 0, 1, 1], [], []>} : vector<8x128xbf16>, vector<128x128xbf16>, vector<8x128xf32> -> vector<8x128xf32>
    %c0_3 = arith.constant 0 : index
    %c0_4 = arith.constant 0 : index
    %3 = vector.load %arg3[%c0_3, %c0_4] : memref<1x128xf32, #tpu.memory_space<vmem>>, vector<1x128xf32>
    %c0_5 = arith.constant 0 : index
    %c0_6 = arith.constant 0 : index
    %4 = vector.load %arg4[%c0_5, %c0_6] : memref<1x128xf32, #tpu.memory_space<vmem>>, vector<1x128xf32>
    %5 = vector.shape_cast %4 : vector<1x128xf32> to vector<1x128xf32>
    %6 = vector.broadcast %5 : vector<1x128xf32> to vector<8x128xf32>
    %c0_7 = arith.constant 0 : index
    %c0_8 = arith.constant 0 : index
    %7 = vector.load %arg5[%c0_7, %c0_8] : memref<1x128xf32, #tpu.memory_space<vmem>>, vector<1x128xf32>
    %8 = vector.shape_cast %7 : vector<1x128xf32> to vector<1x128xf32>
    %9 = vector.broadcast %8 : vector<1x128xf32> to vector<8x128xf32>
    %10 = vector.broadcast %3 : vector<1x128xf32> to vector<8x128xf32>
    %11 = arith.addf %2, %10 : vector<8x128xf32>
    %cst_9 = arith.constant dense<0.000000e+00> : vector<8xf32>
    %12 = vector.multi_reduction <add>, %11, %cst_9 [1] : vector<8x128xf32> to vector<8xf32>
    %13 = vector.shape_cast %12 : vector<8xf32> to vector<8x1xf32>
    %cst_10 = arith.constant 1.280000e+02 : f32
    %14 = vector.broadcast %cst_10 : f32 to vector<8x1xf32>
    %15 = arith.divf %13, %14 : vector<8x1xf32>
    %16 = vector.broadcast %15 : vector<8x1xf32> to vector<8x128xf32>
    %17 = arith.subf %11, %16 : vector<8x128xf32>
    %18 = arith.mulf %17, %17 : vector<8x128xf32>
    %cst_11 = arith.constant dense<0.000000e+00> : vector<8xf32>
    %19 = vector.multi_reduction <add>, %18, %cst_11 [1] : vector<8x128xf32> to vector<8xf32>
    %20 = vector.shape_cast %19 : vector<8xf32> to vector<8x1xf32>
    %cst_12 = arith.constant 1.280000e+02 : f32
    %21 = vector.broadcast %cst_12 : f32 to vector<8x1xf32>
    %22 = arith.divf %20, %21 : vector<8x1xf32>
    %cst_13 = arith.constant 9.99999974E-6 : f32
    %23 = vector.broadcast %cst_13 : f32 to vector<8x1xf32>
    %24 = arith.addf %22, %23 : vector<8x1xf32>
    %25 = math.rsqrt %24 : vector<8x1xf32>
    %26 = vector.broadcast %25 : vector<8x1xf32> to vector<8x128xf32>
    %27 = arith.mulf %17, %26 : vector<8x128xf32>
    %28 = arith.mulf %27, %6 : vector<8x128xf32>
    %29 = arith.addf %28, %9 : vector<8x128xf32>
    %c0_14 = arith.constant 0 : index
    %c0_15 = arith.constant 0 : index
    %30 = vector.load %arg6[%c0_14, %c0_15] : memref<8x128xf32, #tpu.memory_space<vmem>>, vector<8x128xf32>
    tpu.vector_store %arg6[%c0_14, %c0_15], %29 {strides = array<i32>} : memref<8x128xf32, #tpu.memory_space<vmem>>, vector<8x128xf32>,
    return
  }
  func.func @transform_0(%arg0: i32) -> (i32, i32) {
    %c0_i32 = arith.constant 0 : i32
    %c0_i32_0 = arith.constant 0 : i32
    %c0_i32_1 = arith.constant 0 : i32
    return %c0_i32, %c0_i32_0 : i32, i32
  }
  func.func @transform_1(%arg0: i32) -> (i32, i32) {
    %c0_i32 = arith.constant 0 : i32
    %c0_i32_0 = arith.constant 0 : i32
    return %c0_i32, %arg0 : i32, i32
  }
  func.func @transform_2(%arg0: i32) -> (i32, i32) {
    %c0_i32 = arith.constant 0 : i32
    %c0_i32_0 = arith.constant 0 : i32
    return %c0_i32, %arg0 : i32, i32
  }
  func.func @transform_3(%arg0: i32) -> (i32, i32) {
    %c0_i32 = arith.constant 0 : i32
    %c0_i32_0 = arith.constant 0 : i32
    %c0_i32_1 = arith.constant 0 : i32
    return %c0_i32, %c0_i32_0 : i32, i32
  }
  func.func @transform_4(%arg0: i32) -> (i32, i32) {
    %c0_i32 = arith.constant 0 : i32
    %c0_i32_0 = arith.constant 0 : i32
    %c0_i32_1 = arith.constant 0 : i32
    return %c0_i32, %c0_i32_0 : i32, i32
  }
  func.func @transform_5(%arg0: i32) -> (i32, i32) {
    %c0_i32 = arith.constant 0 : i32
    %c0_i32_0 = arith.constant 0 : i32
    return %c0_i32, %arg0 : i32, i32
  }
}

</mosaic_0001>

<llo_original>
// kernel: tpu_custom_call.1
$region0: #{tpu_custom_call.1}
  #allocation0 [shape = 'u32[]', space=smem, size = 0x4, offset = 0x4, fixed_abs, tag = 'smem constant byte address 0x4 - core index']
  #allocation1 [shape = 'u32[144,128]{1,0:T(1,128)}', space=vmem, size = 0x12000, scoped, tag = 'internal scratch']
  %s0 = inlined_call_operand.hbm [shape: bf16[8,128], index: 0, kind: input, shape index: {}]
  %s1 = inlined_call_operand.hbm [shape: bf16[128,512], index: 1, kind: input, shape index: {}]
  %s2 = inlined_call_operand.hbm [shape: f32[1,512], index: 2, kind: input, shape index: {}]
  %s3 = inlined_call_operand.vmem [shape: f32[1,128], index: 3, kind: input, shape index: {}]
  %s4 = inlined_call_operand.vmem [shape: f32[1,128], index: 4, kind: input, shape index: {}]
  %s5 = inlined_call_operand.hbm [shape: f32[8,512], index: 5, kind: output, shape index: {}]
  %s6 = sld [smem:[#allocation0]]
  $region65: #{tpu_custom_call.1} parent=0
    _
  %s8 = ssub.s32 1, %s6
  %s9 = scalar_select 0, %s8, %s6
  $region1: #{tpu_custom_call.1} parent=0
    #allocation2 [shape = 'u8[2048]{0}', space=vmem, size = 0x800, scoped, tag = 'input window, operand 0, single buffered']
    #allocation3 [shape = 's32[2]{0}', space=sflag, size = 0x8, scoped, tag = 'scoped memory for tpu_custom_call.1']
    #allocation4 [shape = 's32[2]{0}', space=sflag, size = 0x8, scoped, tag = 'scoped memory for tpu_custom_call.1']
    #allocation5 [shape = 'u8[65536]{0}', space=vmem, size = 0x10000, scoped, tag = 'input window, operand 1']
    #allocation6 [shape = 's32[2]{0}', space=sflag, size = 0x8, scoped, tag = 'scoped memory for tpu_custom_call.1']
    #allocation7 [shape = 'u8[1024]{0}', space=vmem, size = 0x400, scoped, tag = 'input window, operand 2']
    #allocation8 [shape = 'u8[8192]{0}', space=vmem, size = 0x2000, scoped, tag = 'output window, operand 0']
    %10 = vsyncpa [#allocation3], 0
    %11 = vsyncpa [#allocation6], 0
    %s12 = scalar_lea.sflag [#allocation6], 1
    %13 = vsyncpa %s12, 0
    %14 = vsyncpa [#allocation4], 0
    %s15 = scalar_lea.sflag [#allocation4], 1
    %16 = vsyncpa %s15, 0
    loop: start=0, step=1, limit=6
    $region2: #{tpu_custom_call.1} parent=1 // loop_pre_header
      _
    $region3: #{tpu_custom_call.1} parent=1 // loop_header
      %s18 = sphi 0, %s22
      %p19 = scmp.ge.s32.totalorder %s18, 6
      %s26 = sphi 0, %s26
      %s28 = sphi 0, %s26
      %s29 = sphi 0, %s28
      %s43 = sphi 0, %s29
      %s49 = sphi 0, %s51
      %s52 = sphi 0, %s49
      %s53 = sphi 0, %s52
      %s69 = sphi 0, %s53
      %s75 = sphi 0, %s77
      %s78 = sphi 0, %s75
      %s79 = sphi 0, %s78
      %s95 = sphi 0, %s79
      %s99 = sphi 0, %s99
      %s101 = sphi 0, %s99
      %s102 = sphi 0, %s101
      %s116 = sphi 0, %s102
      %s120 = sphi 0, %s120
      %s122 = sphi 0, %s120
      %s123 = sphi 0, %s122
      %s137 = sphi 0, %s123
      %s143 = sphi 0, %s145
      %s146 = sphi 0, %s143
      %s147 = sphi 0, %s146
      %s163 = sphi 0, %s147
    $region4: #{tpu_custom_call.1} parent=1 // loop_header_branch
      %21 = sbr.rel (%p19) target = $region8
    $region5: #{tpu_custom_call.1} parent=1 // loop_body
      %s23 = ssub.s32 %s18, 1
      %s24 = ssub.s32 %s18, 2
      %s25 = sadd.s32 %s18, 1
      %s27 = sadd.s32 %s26, 1
      %p30 = scmp.eq.s32.totalorder %s18, 3
      %p31 = scmp.ne.s32.totalorder %s26, %s28
      %p32 = scmp.eq.s32.totalorder %s18, 0
      %p33 = por %p31, %p32
      %p34 = scmp.ne.s32.totalorder %s26, %s28
      %p35 = scmp.eq.s32.totalorder %s23, 3
      %p36 = por %p34, %p35
      %p37 = scmp.ne.s32.totalorder %s28, %s29
      %p38 = scmp.eq.s32.totalorder %s23, 0
      %p39 = por %p37, %p38
      %p40 = scmp.ne.s32.totalorder %s28, %s29
      %p41 = scmp.eq.s32.totalorder %s24, 3
      %p42 = por %p40, %p41
      %p44 = scmp.ne.s32.totalorder %s29, %s43
      %p45 = scmp.eq.s32.totalorder %s24, 0
      %p46 = por %p44, %p45
      %s47 = ssub.s32 %s18, %s25
      %p48 = scmp.eq.s32.totalorder %s47, 0
      %s50 = sadd.s32 %s49, 1
      %s51 = scalar_select %p48, %s49, %s50
      %p54 = pneg %p48
      %p55 = scmp.eq.s32.totalorder %s18, 3
      %p56 = por %p54, %p55
      %p57 = scmp.ne.s32.totalorder %s49, %s52
      %p58 = scmp.eq.s32.totalorder %s18, 0
      %p59 = por %p57, %p58
      %p60 = scmp.ne.s32.totalorder %s49, %s52
      %p61 = scmp.eq.s32.totalorder %s23, 3
      %p62 = por %p60, %p61
      %p63 = scmp.ne.s32.totalorder %s52, %s53
      %p64 = scmp.eq.s32.totalorder %s23, 0
      %p65 = por %p63, %p64
      %p66 = scmp.ne.s32.totalorder %s52, %s53
      %p67 = scmp.eq.s32.totalorder %s24, 3
      %p68 = por %p66, %p67
      %p70 = scmp.ne.s32.totalorder %s53, %s69
      %p71 = scmp.eq.s32.totalorder %s24, 0
      %p72 = por %p70, %p71
      %s73 = ssub.s32 %s18, %s25
      %p74 = scmp.eq.s32.totalorder %s73, 0
      %s76 = sadd.s32 %s75, 1
      %s77 = scalar_select %p74, %s75, %s76
      %p80 = pneg %p74
      %p81 = scmp.eq.s32.totalorder %s18, 3
      %p82 = por %p80, %p81
      %p83 = scmp.ne.s32.totalorder %s75, %s78
      %p84 = scmp.eq.s32.totalorder %s18, 0
      %p85 = por %p83, %p84
      %p86 = scmp.ne.s32.totalorder %s75, %s78
      %p87 = scmp.eq.s32.totalorder %s23, 3
      %p88 = por %p86, %p87
      %p89 = scmp.ne.s32.totalorder %s78, %s79
      %p90 = scmp.eq.s32.totalorder %s23, 0
      %p91 = por %p89, %p90
      %p92 = scmp.ne.s32.totalorder %s78, %s79
      %p93 = scmp.eq.s32.totalorder %s24, 3
      %p94 = por %p92, %p93
      %p96 = scmp.ne.s32.totalorder %s79, %s95
      %p97 = scmp.eq.s32.totalorder %s24, 0
      %p98 = por %p96, %p97
      %s100 = sadd.s32 %s99, 1
      %p103 = scmp.eq.s32.totalorder %s18, 3
      %p104 = scmp.ne.s32.totalorder %s99, %s101
      %p105 = scmp.eq.s32.totalorder %s18, 0
      %p106 = por %p104, %p105
      %p107 = scmp.ne.s32.totalorder %s99, %s101
      %p108 = scmp.eq.s32.totalorder %s23, 3
      %p109 = por %p107, %p108
      %p110 = scmp.ne.s32.totalorder %s101, %s102
      %p111 = scmp.eq.s32.totalorder %s23, 0
      %p112 = por %p110, %p111
      %p113 = scmp.ne.s32.totalorder %s101, %s102
      %p114 = scmp.eq.s32.totalorder %s24, 3
      %p115 = por %p113, %p114
      %p117 = scmp.ne.s32.totalorder %s102, %s116
      %p118 = scmp.eq.s32.totalorder %s24, 0
      %p119 = por %p117, %p118
      %s121 = sadd.s32 %s120, 1
      %p124 = scmp.eq.s32.totalorder %s18, 3
      %p125 = scmp.ne.s32.totalorder %s120, %s122
      %p126 = scmp.eq.s32.totalorder %s18, 0
      %p127 = por %p125, %p126
      %p128 = scmp.ne.s32.totalorder %s120, %s122
      %p129 = scmp.eq.s32.totalorder %s23, 3
      %p130 = por %p128, %p129
      %p131 = scmp.ne.s32.totalorder %s122, %s123
      %p132 = scmp.eq.s32.totalorder %s23, 0
      %p133 = por %p131, %p132
      %p134 = scmp.ne.s32.totalorder %s122, %s123
      %p135 = scmp.eq.s32.totalorder %s24, 3
      %p136 = por %p134, %p135
      %p138 = scmp.ne.s32.totalorder %s123, %s137
      %p139 = scmp.eq.s32.totalorder %s24, 0
      %p140 = por %p138, %p139
      %s141 = ssub.s32 %s18, %s25
      %p142 = scmp.eq.s32.totalorder %s141, 0
      %s144 = sadd.s32 %s143, 1
      %s145 = scalar_select %p142, %s143, %s144
      %p148 = pneg %p142
      %p149 = scmp.eq.s32.totalorder %s18, 3
      %p150 = por %p148, %p149
      %p151 = scmp.ne.s32.totalorder %s143, %s146
      %p152 = scmp.eq.s32.totalorder %s18, 0
      %p153 = por %p151, %p152
      %p154 = scmp.ne.s32.totalorder %s143, %s146
      %p155 = scmp.eq.s32.totalorder %s23, 3
      %p156 = por %p154, %p155
      %p157 = scmp.ne.s32.totalorder %s146, %s147
      %p158 = scmp.eq.s32.totalorder %s23, 0
      %p159 = por %p157, %p158
      %p160 = scmp.ne.s32.totalorder %s146, %s147
      %p161 = scmp.eq.s32.totalorder %s24, 3
      %p162 = por %p160, %p161
      %p164 = scmp.ne.s32.totalorder %s147, %s163
      %p165 = scmp.eq.s32.totalorder %s24, 0
      %p166 = por %p164, %p165
      %p167 = scmp.le.s32.totalorder 1, %s18
      %p168 = scmp.lt.s32.totalorder %s18, 5
      %p169 = pnand %p167, %p168
      %p170 = pneg %p169
      // Predicated region
      $region9: #{tpu_custom_call.1} parent=5 // pred_check
        _
      $region10: #{tpu_custom_call.1} parent=5 // pred_check_branch
        %172 = sbr.rel (%p169) target = $region12
      $region11: #{tpu_custom_call.1} parent=5 // pred_region
        %s173 = ssub.s32 %s18, 1
        // Predicated region
        $region13: #{tpu_custom_call.1} parent=11 // pred_check
          %p174 = pneg %p39
        $region14: #{tpu_custom_call.1} parent=11 // pred_check_branch
          %176 = sbr.rel (%p174) target = $region16
        $region15: #{tpu_custom_call.1} parent=11 // pred_region
          %s178 = ssub.s32 64, 64
          %179 = vsyncadd [#allocation3], %s178
          %s181 = sshll.u32 [#allocation2], 4
          %s182 = int_to_ptr.vmem [resolvable:$true] %s181
          %184 = dma.hbm_to_vmem [thread:$0]  %s0, 64, %s182, [#allocation3]
        $region16: #{tpu_custom_call.1} parent=11 // pred_fallthru
          _
        // Predicated region
        $region17: #{tpu_custom_call.1} parent=11 // pred_check
          %p185 = pneg %p112
        $region18: #{tpu_custom_call.1} parent=11 // pred_check_branch
          %187 = sbr.rel (%p185) target = $region20
        $region19: #{tpu_custom_call.1} parent=11 // pred_region
          _
        $region20: #{tpu_custom_call.1} parent=11 // pred_fallthru
          _
        // Predicated region
        $region21: #{tpu_custom_call.1} parent=11 // pred_check
          %p188 = pneg %p133
        $region22: #{tpu_custom_call.1} parent=11 // pred_check_branch
          %190 = sbr.rel (%p188) target = $region24
        $region23: #{tpu_custom_call.1} parent=11 // pred_region
          _
        $region24: #{tpu_custom_call.1} parent=11 // pred_fallthru
          _
      $region12: #{tpu_custom_call.1} parent=5 // pred_fallthru
        _
      %p191 = scmp.lt.s32.totalorder %s18, 4
      // Predicated region
      $region25: #{tpu_custom_call.1} parent=5 // pred_check
        %p192 = pneg %p191
      $region26: #{tpu_custom_call.1} parent=5 // pred_check_branch
        %194 = sbr.rel (%p192) target = $region28
      $region27: #{tpu_custom_call.1} parent=5 // pred_region
        // Predicated region
        $region29: #{tpu_custom_call.1} parent=27 // pred_check
          %p195 = pneg %p59
        $region30: #{tpu_custom_call.1} parent=27 // pred_check_branch
          %197 = sbr.rel (%p195) target = $region32
        $region31: #{tpu_custom_call.1} parent=27 // pred_region
          %s198 = sand.u32 %s18, 1
          %s199 = scalar_lea.sflag [#allocation6], %s198
          %s200 = sand.u32 %s49, 1
          %s201 = smul.addr %s200, 64
          %s202 = scalar_lea.vmem [#allocation5], %s201
          %s204 = ssub.s32 1024, 1024
          %205 = vsyncadd %s199, %s204
          %s206 = smul.addr %s18, 64
          %s207 = scalar_lea.hbm %s1, %s206
          %s208 = sshll.u32 %s202, 4
          %s209 = int_to_ptr.vmem [resolvable:$true] %s208
          %214 = dma.hbm_to_vmem [thread:$0]  %s207, 1024, %s209, %s199, 256, 64, 4
        $region32: #{tpu_custom_call.1} parent=27 // pred_fallthru
          _
        // Predicated region
        $region33: #{tpu_custom_call.1} parent=27 // pred_check
          %p215 = pneg %p85
        $region34: #{tpu_custom_call.1} parent=27 // pred_check_branch
          %217 = sbr.rel (%p215) target = $region36
        $region35: #{tpu_custom_call.1} parent=27 // pred_region
          %s218 = sand.u32 %s18, 1
          %s219 = scalar_lea.sflag [#allocation6], %s218
          %s220 = sand.u32 %s75, 1
          %s221 = scalar_lea.vmem [#allocation7], %s220
          %s223 = ssub.s32 16, 16
          %224 = vsyncadd %s219, %s223
          %s225 = smul.addr %s18, 16
          %s226 = scalar_lea.hbm %s2, %s225
          %s228 = sshll.u32 %s221, 4
          %s229 = int_to_ptr.vmem [resolvable:$true] %s228
          %231 = dma.hbm_to_vmem [thread:$0]  %s226, 16, %s229, %s219
        $region36: #{tpu_custom_call.1} parent=27 // pred_fallthru
          _
      $region28: #{tpu_custom_call.1} parent=5 // pred_fallthru
        _
      %p232 = scmp.le.s32.totalorder 1, %s18
      %p233 = scmp.lt.s32.totalorder %s18, 5
      %p234 = pnand %p232, %p233
      %p235 = pneg %p234
      // Predicated region
      $region37: #{tpu_custom_call.1} parent=5 // pred_check
        _
      $region38: #{tpu_custom_call.1} parent=5 // pred_check_branch
        %237 = sbr.rel (%p234) target = $region40
      $region39: #{tpu_custom_call.1} parent=5 // pred_region
        %s238 = ssub.s32 %s18, 1
        // Predicated region
        $region41: #{tpu_custom_call.1} parent=39 // pred_check
          %p239 = pneg %p39
        $region42: #{tpu_custom_call.1} parent=39 // pred_check_branch
          %241 = sbr.rel (%p239) target = $region44
        $region43: #{tpu_custom_call.1} parent=39 // pred_region
          %242 = dma.done [#allocation3], 64
        $region44: #{tpu_custom_call.1} parent=39 // pred_fallthru
          _
        %s243 = sand.u32 %s23, 1
        %s244 = scalar_lea.sflag [#allocation6], %s243
        %s245 = sand.u32 %s52, 1
        %s246 = smul.addr %s245, 64
        %s247 = scalar_lea.vmem [#allocation5], %s246
        // Predicated region
        $region45: #{tpu_custom_call.1} parent=39 // pred_check
          %p248 = pneg %p65
        $region46: #{tpu_custom_call.1} parent=39 // pred_check_branch
          %250 = sbr.rel (%p248) target = $region48
        $region47: #{tpu_custom_call.1} parent=39 // pred_region
          %251 = dma.done %s244, 1024
        $region48: #{tpu_custom_call.1} parent=39 // pred_fallthru
          _
        %s252 = sand.u32 %s23, 1
        %s253 = scalar_lea.sflag [#allocation6], %s252
        %s254 = sand.u32 %s78, 1
        %s255 = scalar_lea.vmem [#allocation7], %s254
        // Predicated region
        $region49: #{tpu_custom_call.1} parent=39 // pred_check
          %p256 = pneg %p91
        $region50: #{tpu_custom_call.1} parent=39 // pred_check_branch
          %258 = sbr.rel (%p256) target = $region52
        $region51: #{tpu_custom_call.1} parent=39 // pred_region
          %259 = dma.done %s253, 16
        $region52: #{tpu_custom_call.1} parent=39 // pred_fallthru
          _
        %p260 = pneg %p39
        %p261 = pneg %p36
        %s262 = sand.u32 %s23, 1
        %s263 = scalar_lea.sflag [#allocation6], %s262
        %s264 = sand.u32 %s52, 1
        %s265 = smul.addr %s264, 64
        %s266 = scalar_lea.vmem [#allocation5], %s265
        %p267 = pneg %p65
        %p268 = pneg %p62
        %s269 = sand.u32 %s23, 1
        %s270 = scalar_lea.sflag [#allocation6], %s269
        %s271 = sand.u32 %s78, 1
        %s272 = scalar_lea.vmem [#allocation7], %s271
        %p273 = pneg %p91
        %p274 = pneg %p88
        %p275 = pneg %p112
        %p276 = pneg %p109
        %p277 = pneg %p133
        %p278 = pneg %p130
        %p279 = pneg %p159
        %p280 = pneg %p156
        %s281 = sand.u32 %s146, 1
        %s282 = scalar_lea.sflag [#allocation4], %s281
        %s283 = sand.u32 %s146, 1
        %s284 = smul.addr %s283, 8
        %s285 = scalar_lea.vmem [#allocation8], %s284
        %v287 = vld [vmem:[#allocation2] sm:$0xf]
        %v288 = vld [vmem:[%s247] sm:$0xf]
        %v289 = vld [vmem:[%s247 + $0x4] sm:$0xf]
        %v290 = vld [vmem:[%s247 + $0x8] sm:$0xf]
        %v291 = vld [vmem:[%s247 + $0xc] sm:$0xf]
        %v292 = vld [vmem:[%s247 + $0x10] sm:$0xf]
        %v293 = vld [vmem:[%s247 + $0x14] sm:$0xf]
        %v294 = vld [vmem:[%s247 + $0x18] sm:$0xf]
        %v295 = vld [vmem:[%s247 + $0x1c] sm:$0xf]
        %v296 = vld [vmem:[%s247 + $0x20] sm:$0xf]
        %v297 = vld [vmem:[%s247 + $0x24] sm:$0xf]
        %v298 = vld [vmem:[%s247 + $0x28] sm:$0xf]
        %v299 = vld [vmem:[%s247 + $0x2c] sm:$0xf]
        %v300 = vld [vmem:[%s247 + $0x30] sm:$0xf]
        %v301 = vld [vmem:[%s247 + $0x34] sm:$0xf]
        %v302 = vld [vmem:[%s247 + $0x38] sm:$0xf]
        %v303 = vld [vmem:[%s247 + $0x3c] sm:$0xf]
        %v304 = vld [vmem:[%s255] sm:$0x1]
        %v305 = vld [vmem:[%s3] sm:$0x1]
        %v307 = vlaneseq
        %v308 = vshrl.u32 %v307, 7
        %v309 = vsub.s32 0, %v308
        %v310 = vrot.slane %v305, %v309
        %v312 = vld [vmem:[%s4] sm:$0x1]
        %v314 = vlaneseq
        %v315 = vshrl.u32 %v314, 7
        %v316 = vsub.s32 0, %v315
        %v317 = vrot.slane %v312, %v316
        %v320 = vlaneseq
        %v321 = vshrl.u32 %v320, 7
        %v322 = vsub.s32 0, %v321
        %v323 = vrot.slane %v304, %v322
        %v341 = vunpack.c.l.b16 %v288
        %v342 = vunpack.c.l.b16 %v289
        %v343 = vunpack.c.l.b16 %v290
        %v344 = vunpack.c.l.b16 %v291
        %v345 = vunpack.c.l.b16 %v292
        %v346 = vunpack.c.l.b16 %v293
        %v347 = vunpack.c.l.b16 %v294
        %v348 = vunpack.c.l.b16 %v295
        %v349 = vunpack.c.l.b16 %v296
        %v350 = vunpack.c.l.b16 %v297
        %v351 = vunpack.c.l.b16 %v298
        %v352 = vunpack.c.l.b16 %v299
        %v353 = vunpack.c.l.b16 %v300
        %v354 = vunpack.c.l.b16 %v301
        %v355 = vunpack.c.l.b16 %v302
        %v356 = vunpack.c.l.b16 %v303
        %v357 = vpack.c.b16 %v342, %v341
        %v358 = vpack.c.b16 %v344, %v343
        %v359 = vpack.c.b16 %v346, %v345
        %v360 = vpack.c.b16 %v348, %v347
        %v361 = vpack.c.b16 %v350, %v349
        %v362 = vpack.c.b16 %v352, %v351
        %v363 = vpack.c.b16 %v354, %v353
        %v364 = vpack.c.b16 %v356, %v355
        %373 = vmatprep.subr.bf16.mxu0 0
        %374 = vmatpush1.bf16.msra.mxu0 %v364
        %375 = vmatprep.subr.bf16.mxu0 0
        %376 = vmatpush1.bf16.msra.mxu0 %v363
        %377 = vmatprep.subr.bf16.mxu0 0
        %378 = vmatpush1.bf16.msra.mxu0 %v362
        %379 = vmatprep.subr.bf16.mxu0 0
        %380 = vmatpush1.bf16.msra.mxu0 %v361
        %381 = vmatprep.subr.bf16.mxu0 0
        %382 = vmatpush1.bf16.msra.mxu0 %v360
        %383 = vmatprep.subr.bf16.mxu0 0
        %384 = vmatpush1.bf16.msra.mxu0 %v359
        %385 = vmatprep.subr.bf16.mxu0 0
        %386 = vmatpush1.bf16.msra.mxu0 %v358
        %387 = vmatprep.subr.bf16.mxu0 0
        %388 = vmatpush1.bf16.msra.mxu0 %v357
        %389 = vmatprep.subr.bf16.mxu0 0
        %390 = vmatpush2.bf16.msra.mxu0 0
        %391 = vmatprep.subr.bf16.mxu0 0
        %392 = vmatpush2.bf16.msra.mxu0 0
        %393 = vmatprep.subr.bf16.mxu0 0
        %394 = vmatpush2.bf16.msra.mxu0 0
        %395 = vmatprep.subr.bf16.mxu0 0
        %396 = vmatpush2.bf16.msra.mxu0 0
        %397 = vmatprep.subr.bf16.mxu0 0
        %398 = vmatpush2.bf16.msra.mxu0 0
        %399 = vmatprep.subr.bf16.mxu0 0
        %400 = vmatpush2.bf16.msra.mxu0 0
        %401 = vmatprep.subr.bf16.mxu0 0
        %402 = vmatpush2.bf16.msra.mxu0 0
        %403 = vmatprep.subr.bf16.mxu0 0
        %404 = vmatpush2.bf16.msra.mxu0 0
        %405 = vmatprep.mubr.bf16.mxu0 0
        %406 = vmatmul.mubr.bf16.gmra.mxu0 %v287
        %v407 = vpop.f32.mrf.mxu0
        %v408 = vadd.f32 %v323, %v407
        %v409 = vpop.f32.mrf.mxu0
        %v410 = vpop.f32.mrf.mxu0
        %v411 = vpop.f32.mrf.mxu0
        %412 = vdwg.mxu0
        %413 = vadd.xlane.f32.xlu0 %v408
        %v414 = vpop.xlane.xlu0 %413
        %v415 = vrcp.pop 128.0
        %v416 = vmul.f32 %v414, %v415
        %v417 = vsub.f32 %v408, %v416
        %v418 = vmul.f32 %v417, %v417
        %419 = vadd.xlane.f32.xlu0 %v418
        %v420 = vpop.xlane.xlu0 %419
        %v421 = vmul.f32 %v420, %v415
        %v422 = vadd.f32 %v421, 1e-05
        %v423 = vrsqrt.pop %v422
        %v424 = vmul.f32 %v417, %v423
        %v425 = vmul.f32 %v424, %v310
        %v426 = vadd.f32 %v425, %v317
        %427 = vst [vmem:[%s285] sm:$0xff] %v426
        %s428 = sand.u32 %s146, 1
        %s429 = scalar_lea.sflag [#allocation4], %s428
        %s430 = sand.u32 %s146, 1
        %s431 = smul.addr %s430, 8
        %s432 = scalar_lea.vmem [#allocation8], %s431
        // Predicated region
        $region53: #{tpu_custom_call.1} parent=39 // pred_check
          %p433 = pneg %p156
        $region54: #{tpu_custom_call.1} parent=39 // pred_check_branch
          %435 = sbr.rel (%p433) target = $region56
        $region55: #{tpu_custom_call.1} parent=39 // pred_region
          %s437 = ssub.s32 128, 128
          %438 = vsyncadd %s429, %s437
          %s439 = smul.addr %s23, 128
          %s440 = scalar_lea.hbm %s5, %s439
          %s442 = sshll.u32 %s432, 4
          %s443 = int_to_ptr.vmem [resolvable:$true] %s442
          %445 = dma.vmem_to_hbm [thread:$0]  %s443, 128, %s440, %s429
        $region56: #{tpu_custom_call.1} parent=39 // pred_fallthru
          _
      $region40: #{tpu_custom_call.1} parent=5 // pred_fallthru
        _
      %p446 = scmp.le.s32.totalorder 2, %s18
      // Predicated region
      $region57: #{tpu_custom_call.1} parent=5 // pred_check
        %p447 = pneg %p446
      $region58: #{tpu_custom_call.1} parent=5 // pred_check_branch
        %449 = sbr.rel (%p447) target = $region60
      $region59: #{tpu_custom_call.1} parent=5 // pred_region
        %s450 = ssub.s32 %s18, 2
        // Predicated region
        $region61: #{tpu_custom_call.1} parent=59 // pred_check
          %p451 = pneg %p162
        $region62: #{tpu_custom_call.1} parent=59 // pred_check_branch
          %453 = sbr.rel (%p451) target = $region64
        $region63: #{tpu_custom_call.1} parent=59 // pred_region
          %s454 = sand.u32 %s147, 1
          %s455 = scalar_lea.sflag [#allocation4], %s454
          %s456 = sand.u32 %s147, 1
          %s457 = smul.addr %s456, 8
          %s458 = scalar_lea.vmem [#allocation8], %s457
          %459 = dma.done %s455, 128
        $region64: #{tpu_custom_call.1} parent=59 // pred_fallthru
          _
      $region60: #{tpu_custom_call.1} parent=5 // pred_fallthru
        _
    $region6: #{tpu_custom_call.1} parent=1 // loop_footer
      %s22 = sadd.s32 1, %s18
    $region7: #{tpu_custom_call.1} parent=1 // loop_footer_branch
      %17 = sbr.rel target = $region3
    $region8: #{tpu_custom_call.1} parent=1 // loop_exit
      _
    %460 = vsyncpa [#allocation3], 1
    %s461 = scalar_lea.sflag [#allocation3], 1
    %462 = vsyncpa %s461, 1
    %463 = vsyncpa [#allocation6], 1
    %s464 = scalar_lea.sflag [#allocation6], 1
    %465 = vsyncpa %s464, 1
    %466 = vsyncpa [#allocation4], 1
    %s467 = scalar_lea.sflag [#allocation4], 1
    %468 = vsyncpa %s467, 1

</llo_original>
